<compile_context>
chip_gen: v6e
topology: v6e:2x2x1
jax: 0.10.0
libtpu: 0.0.40
codegen_flags: <defaults>
</compile_context>

<pallas_src>
import jax
import jax.numpy as jnp
from jax.experimental import pallas as pl
from jax.experimental.pallas import tpu as pltpu

# Shapes implied by the module (pooling='attnpool'):
IN_FEATURES = 1024      # np.prod(self.output_shape) == 1024
OUTPUT_SIZE = 256       # output_size default
BATCH = 2


def _round_up(x: int, m: int) -> int:
    return ((x + m - 1) // m) * m


def linear_relu_kernel(x_ref, w_ref, b_ref, o_ref):
    """Fused Linear + ReLU: o = max(x @ w + b, 0).

    x_ref: (TB, F) f32 or bf16 in VMEM
    w_ref: (F, O)  bf16 in VMEM (pre-transposed, resident across batch tiles)
    b_ref: (1, O)  f32 in VMEM  (resident)
    o_ref: (TB, O) f32 or bf16 in VMEM
    """
    x = x_ref[...]
    if x.dtype != jnp.bfloat16:
        x = x.astype(jnp.bfloat16)          # VPU cast, only for f32 inputs
    y = jnp.dot(x, w_ref[...], preferred_element_type=jnp.float32)
    y = y + b_ref[...]
    o_ref[...] = jnp.maximum(y, 0.0).astype(o_ref.dtype)


def _select_tile(B: int, dtype) -> tuple[int, int]:
    """Return (tile_b, b_padded)."""
    if B < 256:
        # Latency path: one full-array block, no pad/slice, grid=(1,).
        return B, B
    # bf16 activations pack 16 rows per sublane group; f32 pack 8.
    sub = 16 if jnp.dtype(dtype) == jnp.bfloat16 else 8
    # Up to 512 rows per tile (amortizes ~0.35us/step overhead; multiple of
    # 256 when it hits the cap, matching v6e's 256-row MXU), but never more
    # than ~half the batch so the parallel grid keeps >= 2 steps for v7x's
    # two TensorCores.
    tile_b = min(512, _round_up(pl.cdiv(B, 2), sub))
    b_padded = _round_up(B, tile_b)
    return tile_b, b_padded


def visual_fc(x, fc_w_t_bf16, fc_b_2d, out_dtype=None):
    """x: (B, F) f32 or bf16; fc_w_t_bf16: (F, O) bf16; fc_b_2d: (1, O) f32."""
    B, F = x.shape
    O = fc_w_t_bf16.shape[1]
    out_dtype = jnp.float32 if out_dtype is None else out_dtype

    tile_b, b_padded = _select_tile(B, x.dtype)
    if b_padded != B:
        x = jnp.pad(x, ((0, b_padded - B), (0, 0)))

    in_bytes = jnp.dtype(x.dtype).itemsize
    out_bytes = jnp.dtype(out_dtype).itemsize
    cost = pl.CostEstimate(
        flops=2 * b_padded * F * O,
        transcendentals=0,
        bytes_accessed=b_padded * F * in_bytes + F * O * 2
        + O * 4 + b_padded * O * out_bytes,
    )

    out = pl.pallas_call(
        linear_relu_kernel,
        out_shape=jax.ShapeDtypeStruct((b_padded, O), out_dtype),
        grid=(b_padded // tile_b,),
        in_specs=[
            pl.BlockSpec((tile_b, F), lambda i: (i, 0)),
            pl.BlockSpec((F, O), lambda i: (0, 0)),   # weight resident
            pl.BlockSpec((1, O), lambda i: (0, 0)),   # bias resident
        ],
        out_specs=pl.BlockSpec((tile_b, O), lambda i: (i, 0)),
        compiler_params=pltpu.CompilerParams(
            dimension_semantics=("parallel",)),
        cost_estimate=cost,
    )(x, fc_w_t_bf16, fc_b_2d)

    return out[:B] if b_padded != B else out


def resnet_clip_encoder_forward(observations, params, no_fc_layer=False,
                                out_dtype=None):
    """Mirrors ResNetCLIPEncoder.forward for the 'rgb_features' branch.

    observations['rgb_features']: (B, 1024) features from the frozen CLIP
    RN50 backbone (attnpool output), f32 or bf16.  Treated as detached
    constants (no gradients flow in this forward-only kernel).
    """
    x = observations["rgb_features"]          # x = x.detach()
    if no_fc_layer:
        return x
    return visual_fc(x, params["fc_w_t"], params["fc_b"], out_dtype=out_dtype)


def init_params(key):
    """Deterministic synthetic init of visual_fc parameters.

    Weight stored pre-transposed (F, O) in bf16; bias stored as (1, O) f32 so
    the forward path has no per-call layout/dtype fixups.
    """
    k_w, k_b = jax.random.split(key)
    bound = 1.0 / (IN_FEATURES ** 0.5)
    # nn.Linear(IN_FEATURES, OUTPUT_SIZE): weight (O, F), bias (O,)
    fc_w = jax.random.uniform(
        k_w, (OUTPUT_SIZE, IN_FEATURES), jnp.float32, -bound, bound)
    fc_b = jax.random.uniform(
        k_b, (OUTPUT_SIZE,), jnp.float32, -bound, bound)
    return {
        "fc_w_t": fc_w.T.astype(jnp.bfloat16),      # (F, O) bf16, once
        "fc_b": fc_b.reshape(1, OUTPUT_SIZE),       # (1, O) f32, once
    }


def _reference(x, params):
    # Same math as the kernel: bf16-rounded inputs/weights, f32 accumulate.
    xb = x.astype(jnp.bfloat16).astype(jnp.float32)
    wt = params["fc_w_t"].astype(jnp.float32)
    return jnp.maximum(xb @ wt + params["fc_b"], 0.0)


if __name__ == "__main__":
    key = jax.random.PRNGKey(0)
    k_feat, k_params = jax.random.split(key)

    params = init_params(k_params)

    # 1) Default tiny batch, f32 features: small-batch latency path
    #    (full-array block, grid=(1,), no pad/slice).
    rgb_features = jax.random.normal(k_feat, (BATCH, IN_FEATURES), jnp.float32)
    observations = {"rgb_features": rgb_features}
    out = resnet_clip_encoder_forward(observations, params)
    out = jax.block_until_ready(out)
    assert out.shape == (BATCH, OUTPUT_SIZE)
    assert out.dtype == jnp.float32
    assert jnp.allclose(out, _reference(rgb_features, params),
                        atol=1e-2, rtol=1e-2)

    # 2) Odd small batch (12): still no pad/slice — full-array block.
    feats12 = jax.random.normal(jax.random.PRNGKey(1), (12, IN_FEATURES),
                                jnp.float32)
    out12 = resnet_clip_encoder_forward({"rgb_features": feats12}, params)
    out12 = jax.block_until_ready(out12)
    assert out12.shape == (12, OUTPUT_SIZE)
    assert jnp.allclose(out12, _reference(feats12, params),
                        atol=1e-2, rtol=1e-2)

    # 3) Large batch, bf16 features in / bf16 out: tiled path with >= 2 grid
    #    steps (v7x dual-TC), bf16 sublane packing respected.
    feats_big = jax.random.normal(jax.random.PRNGKey(2),
                                  (320, IN_FEATURES),
                                  jnp.float32).astype(jnp.bfloat16)
    out_big = resnet_clip_encoder_forward(
        {"rgb_features": feats_big}, params, out_dtype=jnp.bfloat16)
    out_big = jax.block_until_ready(out_big)
    assert out_big.shape == (320, OUTPUT_SIZE)
    assert out_big.dtype == jnp.bfloat16
    ref_big = _reference(feats_big, params)
    assert jnp.allclose(out_big.astype(jnp.float32), ref_big,
                        atol=3e-2, rtol=3e-2)

    # 4) no_fc_layer=True path returns the detached features unchanged.
    feats = resnet_clip_encoder_forward(observations, params, no_fc_layer=True)
    feats = jax.block_until_ready(feats)
    assert feats.shape == (BATCH, IN_FEATURES)
    assert jnp.allclose(feats, rgb_features)

    print("KERNEL_OK")
</pallas_src>

<mosaic_0001>
module attributes {stable_mosaic.version = 11 : i64} {
  func.func @linear_relu_kernel(%arg0: i32, %arg1: memref<2x1024xf32, #tpu.memory_space<vmem>>, %arg2: memref<1024x256xbf16, #tpu.memory_space<vmem>>, %arg3: memref<1x256xf32, #tpu.memory_space<vmem>>, %arg4: memref<2x256xf32, #tpu.memory_space<vmem>>) attributes {dimension_semantics = [#tpu.dimension_semantics<parallel>], iteration_bounds = array<i64: 1>, scalar_prefetch = 0 : i64, scratch_operands = 0 : i64, tpu.core_type = #tpu.core_type<tc>, window_params = [{transform_indices = @transform_0, window_bounds = array<i64: 2, 1024>}, {pipeline_mode = #tpu.pipeline_mode<synchronous>, transform_indices = @transform_1, window_bounds = array<i64: 1024, 256>}, {pipeline_mode = #tpu.pipeline_mode<synchronous>, transform_indices = @transform_2, window_bounds = array<i64: 1, 256>}, {transform_indices = @transform_3, window_bounds = array<i64: 2, 256>}]} {
    %c0 = arith.constant 0 : index
    %c0_0 = arith.constant 0 : index
    %0 = vector.load %arg1[%c0, %c0_0] : memref<2x1024xf32, #tpu.memory_space<vmem>>, vector<2x1024xf32>
    %1 = arith.truncf %0 : vector<2x1024xf32> to vector<2x1024xbf16>
    %c0_1 = arith.constant 0 : index
    %c0_2 = arith.constant 0 : index
    %2 = vector.load %arg2[%c0_1, %c0_2] : memref<1024x256xbf16, #tpu.memory_space<vmem>>, vector<1024x256xbf16>
    %cst = arith.constant dense<0.000000e+00> : vector<2x256xf32>
    %3 = tpu.matmul %1, %2, %cst {dimension_numbers = #tpu.dot_dimension_numbers<[1], [0], [0], [1], [0, 0, 1, 1], [], []>} : vector<2x1024xbf16>, vector<1024x256xbf16>, vector<2x256xf32> -> vector<2x256xf32>
    %c0_3 = arith.constant 0 : index
    %c0_4 = arith.constant 0 : index
    %4 = vector.load %arg3[%c0_3, %c0_4] : memref<1x256xf32, #tpu.memory_space<vmem>>, vector<1x256xf32>
    %5 = vector.broadcast %4 : vector<1x256xf32> to vector<2x256xf32>
    %6 = arith.addf %3, %5 : vector<2x256xf32>
    %cst_5 = arith.constant 0.000000e+00 : f32
    %7 = vector.broadcast %cst_5 : f32 to vector<2x256xf32>
    %8 = arith.maximumf %6, %7 : vector<2x256xf32>
    %c0_6 = arith.constant 0 : index
    %c0_7 = arith.constant 0 : index
    %9 = vector.load %arg4[%c0_6, %c0_7] : memref<2x256xf32, #tpu.memory_space<vmem>>, vector<2x256xf32>
    tpu.vector_store %arg4[%c0_6, %c0_7], %8 {strides = array<i32>} : memref<2x256xf32, #tpu.memory_space<vmem>>, vector<2x256xf32>,
    return
  }
  func.func @transform_0(%arg0: i32) -> (i32, i32) {
    %c0_i32 = arith.constant 0 : i32
    %c0_i32_0 = arith.constant 0 : i32
    return %arg0, %c0_i32 : i32, i32
  }
  func.func @transform_1(%arg0: i32) -> (i32, i32) {
    %c0_i32 = arith.constant 0 : i32
    %c0_i32_0 = arith.constant 0 : i32
    %c0_i32_1 = arith.constant 0 : i32
    return %c0_i32, %c0_i32_0 : i32, i32
  }
  func.func @transform_2(%arg0: i32) -> (i32, i32) {
    %c0_i32 = arith.constant 0 : i32
    %c0_i32_0 = arith.constant 0 : i32
    %c0_i32_1 = arith.constant 0 : i32
    return %c0_i32, %c0_i32_0 : i32, i32
  }
  func.func @transform_3(%arg0: i32) -> (i32, i32) {
    %c0_i32 = arith.constant 0 : i32
    %c0_i32_0 = arith.constant 0 : i32
    return %arg0, %c0_i32 : i32, i32
  }
}

</mosaic_0001>

<llo_original>
// kernel: tpu_custom_call.1
$region0: #{tpu_custom_call.1}
  #allocation0 [shape = 'u32[]', space=smem, size = 0x4, offset = 0x4, fixed_abs, tag = 'smem constant byte address 0x4 - core index']
  #allocation1 [shape = 'u32[144,128]{1,0:T(1,128)}', space=vmem, size = 0x12000, scoped, tag = 'internal scratch']
  %s0 = inlined_call_operand.hbm [shape: f32[2,1024], index: 0, kind: input, shape index: {}]
  %s1 = inlined_call_operand.hbm [shape: bf16[1024,256], index: 1, kind: input, shape index: {}]
  %s2 = inlined_call_operand.vmem [shape: f32[1,256], index: 2, kind: input, shape index: {}]
  %s3 = inlined_call_operand.hbm [shape: f32[2,256], index: 3, kind: output, shape index: {}]
  %s4 = sld [smem:[#allocation0]]
  $region30: #{tpu_custom_call.1} parent=0
    _
  %s6 = ssub.s32 1, %s4
  %s7 = scalar_select 0, %s6, %s4
  $region1: #{tpu_custom_call.1} parent=0
    #allocation2 [shape = 'u8[8192]{0}', space=vmem, size = 0x2000, scoped, tag = 'input window, operand 0, single buffered']
    #allocation3 [shape = 's32[1]{0}', space=sflag, size = 0x4, scoped, tag = 'scoped memory for tpu_custom_call.1']
    #allocation4 [shape = 's32[1]{0}', space=sflag, size = 0x4, scoped, tag = 'scoped memory for tpu_custom_call.1']
    #allocation5 [shape = 'u8[524288]{0}', space=vmem, size = 0x80000, scoped, tag = 'input window, operand 1, single buffered']
    #allocation6 [shape = 's32[1]{0}', space=sflag, size = 0x4, scoped, tag = 'scoped memory for tpu_custom_call.1']
    #allocation7 [shape = 'u8[2048]{0}', space=vmem, size = 0x800, scoped, tag = 'output window, operand 0, single buffered']
    %8 = vsyncpa [#allocation3], 0
    %9 = vsyncpa [#allocation6], 0
    %10 = vsyncpa [#allocation4], 0
    // Predicated region
    $region2: #{tpu_custom_call.1} parent=1 // pred_check
      _
    $region3: #{tpu_custom_call.1} parent=1 // pred_check_branch
      %12 = sbr.rel (0) target = $region5
    $region4: #{tpu_custom_call.1} parent=1 // pred_region
      %s14 = ssub.s32 256, 256
      %15 = vsyncadd [#allocation3], %s14
      %s17 = sshll.u32 [#allocation2], 4
      %s18 = int_to_ptr.vmem [resolvable:$true] %s17
      %20 = dma.hbm_to_vmem [thread:$0]  %s0, 256, %s18, [#allocation3]
    $region5: #{tpu_custom_call.1} parent=1 // pred_fallthru
      _
    // Predicated region
    $region6: #{tpu_custom_call.1} parent=1 // pred_check
      _
    $region7: #{tpu_custom_call.1} parent=1 // pred_check_branch
      %22 = sbr.rel (0) target = $region9
    $region8: #{tpu_custom_call.1} parent=1 // pred_region
      %s24 = ssub.s32 16384, 16384
      %25 = vsyncadd [#allocation6], %s24
      %s26 = sshll.u32 [#allocation5], 4
      %s27 = int_to_ptr.vmem [resolvable:$true] %s26
      %32 = dma.hbm_to_vmem [thread:$0]  %s1, 16384, %s27, [#allocation6], 128, 128, 8
    $region9: #{tpu_custom_call.1} parent=1 // pred_fallthru
      _
    // Predicated region
    $region10: #{tpu_custom_call.1} parent=1 // pred_check
      _
    $region11: #{tpu_custom_call.1} parent=1 // pred_check_branch
      %34 = sbr.rel (0) target = $region13
    $region12: #{tpu_custom_call.1} parent=1 // pred_region
      _
    $region13: #{tpu_custom_call.1} parent=1 // pred_fallthru
      _
    // Predicated region
    $region14: #{tpu_custom_call.1} parent=1 // pred_check
      _
    $region15: #{tpu_custom_call.1} parent=1 // pred_check_branch
      %36 = sbr.rel (0) target = $region17
    $region16: #{tpu_custom_call.1} parent=1 // pred_region
      %37 = dma.done [#allocation3], 256
    $region17: #{tpu_custom_call.1} parent=1 // pred_fallthru
      _
    // Predicated region
    $region18: #{tpu_custom_call.1} parent=1 // pred_check
      _
    $region19: #{tpu_custom_call.1} parent=1 // pred_check_branch
      %39 = sbr.rel (0) target = $region21
    $region20: #{tpu_custom_call.1} parent=1 // pred_region
      %40 = dma.done [#allocation6], 16384
    $region21: #{tpu_custom_call.1} parent=1 // pred_fallthru
      _
    %v41 = vld [vmem:[#allocation2] sm:$0xff]
    %v42 = vld [vmem:[#allocation2 + $0x8] sm:$0xff]
    %v45 = vcombine.high %v41, %v41
    %v47 = vunpack.c.l.s4 1983009808
    %v48 = vunpack.c.0.s8 %v47
    %v49 = vlaneseq
    %v50 = vshrl.u32 %v49, 7
    %v51 = vsub.s32 %v48, %v50
    %v52 = vrot.slane %v41, %v51
    %v54 = vunpack.c.l.s4 1983009808
    %v55 = vunpack.c.0.s8 %v54
    %v56 = vlaneseq
    %v57 = vshrl.u32 %v56, 7
    %v58 = vsub.s32 %v55, %v57
    %v59 = vrot.slane %v45, %v58
    %v60 = vcombine.high %v52, %v52
    %v61 = vcombine.high %v59, %v59
    %v62 = vcombine.high %v42, %v42
    %v64 = vunpack.c.l.s4 1983009808
    %v65 = vunpack.c.0.s8 %v64
    %v66 = vlaneseq
    %v67 = vshrl.u32 %v66, 7
    %v68 = vsub.s32 %v65, %v67
    %v69 = vrot.slane %v42, %v68
    %v71 = vunpack.c.l.s4 1983009808
    %v72 = vunpack.c.0.s8 %v71
    %v73 = vlaneseq
    %v74 = vshrl.u32 %v73, 7
    %v75 = vsub.s32 %v72, %v74
    %v76 = vrot.slane %v62, %v75
    %v77 = vcombine.high %v69, %v69
    %v78 = vcombine.high %v76, %v76
    %v87 = vpack.c.bf16 %v52, %v52
    %v88 = vpack.c.bf16 %v60, %v60
    %v89 = vpack.c.bf16 %v59, %v59
    %v90 = vpack.c.bf16 %v61, %v61
    %v91 = vpack.c.bf16 %v69, %v69
    %v92 = vpack.c.bf16 %v77, %v77
    %v93 = vpack.c.bf16 %v76, %v76
    %v94 = vpack.c.bf16 %v78, %v78
    %v95 = vld [vmem:[#allocation5] sm:$0xff]
    %v96 = vld [vmem:[#allocation5 + $0x8] sm:$0xff]
    %v97 = vld [vmem:[#allocation5 + $0x10] sm:$0xff]
    %v98 = vld [vmem:[#allocation5 + $0x18] sm:$0xff]
    %v99 = vld [vmem:[#allocation5 + $0x20] sm:$0xff]
    %v100 = vld [vmem:[#allocation5 + $0x28] sm:$0xff]
    %v101 = vld [vmem:[#allocation5 + $0x30] sm:$0xff]
    %v102 = vld [vmem:[#allocation5 + $0x38] sm:$0xff]
    %v103 = vld [vmem:[#allocation5 + $0x40] sm:$0xff]
    %v104 = vld [vmem:[#allocation5 + $0x48] sm:$0xff]
    %v105 = vld [vmem:[#allocation5 + $0x50] sm:$0xff]
    %v106 = vld [vmem:[#allocation5 + $0x58] sm:$0xff]
    %v107 = vld [vmem:[#allocation5 + $0x60] sm:$0xff]
    %v108 = vld [vmem:[#allocation5 + $0x68] sm:$0xff]
    %v109 = vld [vmem:[#allocation5 + $0x70] sm:$0xff]
    %v110 = vld [vmem:[#allocation5 + $0x78] sm:$0xff]
    %v111 = vld [vmem:[#allocation5 + $0x80] sm:$0xff]
    %v112 = vld [vmem:[#allocation5 + $0x88] sm:$0xff]
    %v113 = vld [vmem:[#allocation5 + $0x90] sm:$0xff]
    %v114 = vld [vmem:[#allocation5 + $0x98] sm:$0xff]
    %v115 = vld [vmem:[#allocation5 + $0xa0] sm:$0xff]
    %v116 = vld [vmem:[#allocation5 + $0xa8] sm:$0xff]
    %v117 = vld [vmem:[#allocation5 + $0xb0] sm:$0xff]
    %v118 = vld [vmem:[#allocation5 + $0xb8] sm:$0xff]
    %v119 = vld [vmem:[#allocation5 + $0xc0] sm:$0xff]
    %v120 = vld [vmem:[#allocation5 + $0xc8] sm:$0xff]
    %v121 = vld [vmem:[#allocation5 + $0xd0] sm:$0xff]
    %v122 = vld [vmem:[#allocation5 + $0xd8] sm:$0xff]
    %v123 = vld [vmem:[#allocation5 + $0xe0] sm:$0xff]
    %v124 = vld [vmem:[#allocation5 + $0xe8] sm:$0xff]
    %v125 = vld [vmem:[#allocation5 + $0xf0] sm:$0xff]
    %v126 = vld [vmem:[#allocation5 + $0xf8] sm:$0xff]
    %v127 = vld [vmem:[#allocation5 + $0x100] sm:$0xff]
    %v128 = vld [vmem:[#allocation5 + $0x108] sm:$0xff]
    %v129 = vld [vmem:[#allocation5 + $0x110] sm:$0xff]
    %v130 = vld [vmem:[#allocation5 + $0x118] sm:$0xff]
    %v131 = vld [vmem:[#allocation5 + $0x120] sm:$0xff]
    %v132 = vld [vmem:[#allocation5 + $0x128] sm:$0xff]
    %v133 = vld [vmem:[#allocation5 + $0x130] sm:$0xff]
    %v134 = vld [vmem:[#allocation5 + $0x138] sm:$0xff]
    %v135 = vld [vmem:[#allocation5 + $0x140] sm:$0xff]
    %v136 = vld [vmem:[#allocation5 + $0x148] sm:$0xff]
    %v137 = vld [vmem:[#allocation5 + $0x150] sm:$0xff]
    %v138 = vld [vmem:[#allocation5 + $0x158] sm:$0xff]
    %v139 = vld [vmem:[#allocation5 + $0x160] sm:$0xff]
    %v140 = vld [vmem:[#allocation5 + $0x168] sm:$0xff]
    %v141 = vld [vmem:[#allocation5 + $0x170] sm:$0xff]
    %v142 = vld [vmem:[#allocation5 + $0x178] sm:$0xff]
    %v143 = vld [vmem:[#allocation5 + $0x180] sm:$0xff]
    %v144 = vld [vmem:[#allocation5 + $0x188] sm:$0xff]
    %v145 = vld [vmem:[#allocation5 + $0x190] sm:$0xff]
    %v146 = vld [vmem:[#allocation5 + $0x198] sm:$0xff]
    %v147 = vld [vmem:[#allocation5 + $0x1a0] sm:$0xff]
    %v148 = vld [vmem:[#allocation5 + $0x1a8] sm:$0xff]
    %v149 = vld [vmem:[#allocation5 + $0x1b0] sm:$0xff]
    %v150 = vld [vmem:[#allocation5 + $0x1b8] sm:$0xff]
    %v151 = vld [vmem:[#allocation5 + $0x1c0] sm:$0xff]
    %v152 = vld [vmem:[#allocation5 + $0x1c8] sm:$0xff]
    %v153 = vld [vmem:[#allocation5 + $0x1d0] sm:$0xff]
    %v154 = vld [vmem:[#allocation5 + $0x1d8] sm:$0xff]
    %v155 = vld [vmem:[#allocation5 + $0x1e0] sm:$0xff]
    %v156 = vld [vmem:[#allocation5 + $0x1e8] sm:$0xff]
    %v157 = vld [vmem:[#allocation5 + $0x1f0] sm:$0xff]
    %v158 = vld [vmem:[#allocation5 + $0x1f8] sm:$0xff]
    %v159 = vld [vmem:[#allocation5 + $0x200] sm:$0xff]
    %v160 = vld [vmem:[#allocation5 + $0x208] sm:$0xff]
    %v161 = vld [vmem:[#allocation5 + $0x210] sm:$0xff]
    %v162 = vld [vmem:[#allocation5 + $0x218] sm:$0xff]
    %v163 = vld [vmem:[#allocation5 + $0x220] sm:$0xff]
    %v164 = vld [vmem:[#allocation5 + $0x228] sm:$0xff]
    %v165 = vld [vmem:[#allocation5 + $0x230] sm:$0xff]
    %v166 = vld [vmem:[#allocation5 + $0x238] sm:$0xff]
    %v167 = vld [vmem:[#allocation5 + $0x240] sm:$0xff]
    %v168 = vld [vmem:[#allocation5 + $0x248] sm:$0xff]
    %v169 = vld [vmem:[#allocation5 + $0x250] sm:$0xff]
    %v170 = vld [vmem:[#allocation5 + $0x258] sm:$0xff]
    %v171 = vld [vmem:[#allocation5 + $0x260] sm:$0xff]
    %v172 = vld [vmem:[#allocation5 + $0x268] sm:$0xff]
    %v173 = vld [vmem:[#allocation5 + $0x270] sm:$0xff]
    %v174 = vld [vmem:[#allocation5 + $0x278] sm:$0xff]
    %v175 = vld [vmem:[#allocation5 + $0x280] sm:$0xff]
    %v176 = vld [vmem:[#allocation5 + $0x288] sm:$0xff]
    %v177 = vld [vmem:[#allocation5 + $0x290] sm:$0xff]
    %v178 = vld [vmem:[#allocation5 + $0x298] sm:$0xff]
    %v179 = vld [vmem:[#allocation5 + $0x2a0] sm:$0xff]
    %v180 = vld [vmem:[#allocation5 + $0x2a8] sm:$0xff]
    %v181 = vld [vmem:[#allocation5 + $0x2b0] sm:$0xff]
    %v182 = vld [vmem:[#allocation5 + $0x2b8] sm:$0xff]
    %v183 = vld [vmem:[#allocation5 + $0x2c0] sm:$0xff]
    %v184 = vld [vmem:[#allocation5 + $0x2c8] sm:$0xff]
    %v185 = vld [vmem:[#allocation5 + $0x2d0] sm:$0xff]
    %v186 = vld [vmem:[#allocation5 + $0x2d8] sm:$0xff]
    %v187 = vld [vmem:[#allocation5 + $0x2e0] sm:$0xff]
    %v188 = vld [vmem:[#allocation5 + $0x2e8] sm:$0xff]
    %v189 = vld [vmem:[#allocation5 + $0x2f0] sm:$0xff]
    %v190 = vld [vmem:[#allocation5 + $0x2f8] sm:$0xff]
    %v191 = vld [vmem:[#allocation5 + $0x300] sm:$0xff]
    %v192 = vld [vmem:[#allocation5 + $0x308] sm:$0xff]
    %v193 = vld [vmem:[#allocation5 + $0x310] sm:$0xff]
    %v194 = vld [vmem:[#allocation5 + $0x318] sm:$0xff]
    %v195 = vld [vmem:[#allocation5 + $0x320] sm:$0xff]
    %v196 = vld [vmem:[#allocation5 + $0x328] sm:$0xff]
    %v197 = vld [vmem:[#allocation5 + $0x330] sm:$0xff]
    %v198 = vld [vmem:[#allocation5 + $0x338] sm:$0xff]
    %v199 = vld [vmem:[#allocation5 + $0x340] sm:$0xff]
    %v200 = vld [vmem:[#allocation5 + $0x348] sm:$0xff]
    %v201 = vld [vmem:[#allocation5 + $0x350] sm:$0xff]
    %v202 = vld [vmem:[#allocation5 + $0x358] sm:$0xff]
    %v203 = vld [vmem:[#allocation5 + $0x360] sm:$0xff]
    %v204 = vld [vmem:[#allocation5 + $0x368] sm:$0xff]
    %v205 = vld [vmem:[#allocation5 + $0x370] sm:$0xff]
    %v206 = vld [vmem:[#allocation5 + $0x378] sm:$0xff]
    %v207 = vld [vmem:[#allocation5 + $0x380] sm:$0xff]
    %v208 = vld [vmem:[#allocation5 + $0x388] sm:$0xff]
    %v209 = vld [vmem:[#allocation5 + $0x390] sm:$0xff]
    %v210 = vld [vmem:[#allocation5 + $0x398] sm:$0xff]
    %v211 = vld [vmem:[#allocation5 + $0x3a0] sm:$0xff]
    %v212 = vld [vmem:[#allocation5 + $0x3a8] sm:$0xff]
    %v213 = vld [vmem:[#allocation5 + $0x3b0] sm:$0xff]
    %v214 = vld [vmem:[#allocation5 + $0x3b8] sm:$0xff]
    %v215 = vld [vmem:[#allocation5 + $0x3c0] sm:$0xff]
    %v216 = vld [vmem:[#allocation5 + $0x3c8] sm:$0xff]
    %v217 = vld [vmem:[#allocation5 + $0x3d0] sm:$0xff]
    %v218 = vld [vmem:[#allocation5 + $0x3d8] sm:$0xff]
    %v219 = vld [vmem:[#allocation5 + $0x3e0] sm:$0xff]
    %v220 = vld [vmem:[#allocation5 + $0x3e8] sm:$0xff]
    %v221 = vld [vmem:[#allocation5 + $0x3f0] sm:$0xff]
    %v222 = vld [vmem:[#allocation5 + $0x3f8] sm:$0xff]
    %v223 = vld [vmem:[%s2] sm:$0x3]
    %v225 = vlaneseq
    %v226 = vshrl.u32 %v225, 7
    %v227 = vsub.s32 0, %v226
    %v228 = vrot.slane %v223, %v227
    %v229 = vlaneseq
    %v230 = vshrl.u32 %v229, 7
    %v231 = vsub.s32 1, %v230
    %v232 = vrot.slane %v223, %v231
    %v363 = vunpack.c.l.b16 %v95
    %v364 = vunpack.c.h.b16 %v95
    %v365 = vunpack.c.l.b16 %v96
    %v366 = vunpack.c.h.b16 %v96
    %v367 = vunpack.c.l.b16 %v97
    %v368 = vunpack.c.h.b16 %v97
    %v369 = vunpack.c.l.b16 %v98
    %v370 = vunpack.c.h.b16 %v98
    %v371 = vunpack.c.l.b16 %v99
    %v372 = vunpack.c.h.b16 %v99
    %v373 = vunpack.c.l.b16 %v100
    %v374 = vunpack.c.h.b16 %v100
    %v375 = vunpack.c.l.b16 %v101
    %v376 = vunpack.c.h.b16 %v101
    %v377 = vunpack.c.l.b16 %v102
    %v378 = vunpack.c.h.b16 %v102
    %v379 = vunpack.c.l.b16 %v103
    %v380 = vunpack.c.h.b16 %v103
    %v381 = vunpack.c.l.b16 %v104
    %v382 = vunpack.c.h.b16 %v104
    %v383 = vunpack.c.l.b16 %v105
    %v384 = vunpack.c.h.b16 %v105
    %v385 = vunpack.c.l.b16 %v106
    %v386 = vunpack.c.h.b16 %v106
    %v387 = vunpack.c.l.b16 %v107
    %v388 = vunpack.c.h.b16 %v107
    %v389 = vunpack.c.l.b16 %v108
    %v390 = vunpack.c.h.b16 %v108
    %v391 = vunpack.c.l.b16 %v109
    %v392 = vunpack.c.h.b16 %v109
    %v393 = vunpack.c.l.b16 %v110
    %v394 = vunpack.c.h.b16 %v110
    %v395 = vunpack.c.l.b16 %v111
    %v396 = vunpack.c.h.b16 %v111
    %v397 = vunpack.c.l.b16 %v112
    %v398 = vunpack.c.h.b16 %v112
    %v399 = vunpack.c.l.b16 %v113
    %v400 = vunpack.c.h.b16 %v113
    %v401 = vunpack.c.l.b16 %v114
    %v402 = vunpack.c.h.b16 %v114
    %v403 = vunpack.c.l.b16 %v115
    %v404 = vunpack.c.h.b16 %v115
    %v405 = vunpack.c.l.b16 %v116
    %v406 = vunpack.c.h.b16 %v116
    %v407 = vunpack.c.l.b16 %v117
    %v408 = vunpack.c.h.b16 %v117
    %v409 = vunpack.c.l.b16 %v118
    %v410 = vunpack.c.h.b16 %v118
    %v411 = vunpack.c.l.b16 %v119
    %v412 = vunpack.c.h.b16 %v119
    %v413 = vunpack.c.l.b16 %v120
    %v414 = vunpack.c.h.b16 %v120
    %v415 = vunpack.c.l.b16 %v121
    %v416 = vunpack.c.h.b16 %v121
    %v417 = vunpack.c.l.b16 %v122
    %v418 = vunpack.c.h.b16 %v122
    %v419 = vunpack.c.l.b16 %v123
    %v420 = vunpack.c.h.b16 %v123
    %v421 = vunpack.c.l.b16 %v124
    %v422 = vunpack.c.h.b16 %v124
    %v423 = vunpack.c.l.b16 %v125
    %v424 = vunpack.c.h.b16 %v125
    %v425 = vunpack.c.l.b16 %v126
    %v426 = vunpack.c.h.b16 %v126
    %v427 = vunpack.c.l.b16 %v127
    %v428 = vunpack.c.h.b16 %v127
    %v429 = vunpack.c.l.b16 %v128
    %v430 = vunpack.c.h.b16 %v128
    %v431 = vunpack.c.l.b16 %v129
    %v432 = vunpack.c.h.b16 %v129
    %v433 = vunpack.c.l.b16 %v130
    %v434 = vunpack.c.h.b16 %v130
    %v435 = vunpack.c.l.b16 %v131
    %v436 = vunpack.c.h.b16 %v131
    %v437 = vunpack.c.l.b16 %v132
    %v438 = vunpack.c.h.b16 %v132
    %v439 = vunpack.c.l.b16 %v133
    %v440 = vunpack.c.h.b16 %v133
    %v441 = vunpack.c.l.b16 %v134
    %v442 = vunpack.c.h.b16 %v134
    %v443 = vunpack.c.l.b16 %v135
    %v444 = vunpack.c.h.b16 %v135
    %v445 = vunpack.c.l.b16 %v136
    %v446 = vunpack.c.h.b16 %v136
    %v447 = vunpack.c.l.b16 %v137
    %v448 = vunpack.c.h.b16 %v137
    %v449 = vunpack.c.l.b16 %v138
    %v450 = vunpack.c.h.b16 %v138
    %v451 = vunpack.c.l.b16 %v139
    %v452 = vunpack.c.h.b16 %v139
    %v453 = vunpack.c.l.b16 %v140
    %v454 = vunpack.c.h.b16 %v140
    %v455 = vunpack.c.l.b16 %v141
    %v456 = vunpack.c.h.b16 %v141
    %v457 = vunpack.c.l.b16 %v142
    %v458 = vunpack.c.h.b16 %v142
    %v459 = vunpack.c.l.b16 %v143
    %v460 = vunpack.c.h.b16 %v143
    %v461 = vunpack.c.l.b16 %v144
    %v462 = vunpack.c.h.b16 %v144
    %v463 = vunpack.c.l.b16 %v145
    %v464 = vunpack.c.h.b16 %v145
    %v465 = vunpack.c.l.b16 %v146
    %v466 = vunpack.c.h.b16 %v146
    %v467 = vunpack.c.l.b16 %v147
    %v468 = vunpack.c.h.b16 %v147
    %v469 = vunpack.c.l.b16 %v148
    %v470 = vunpack.c.h.b16 %v148
    %v471 = vunpack.c.l.b16 %v149
    %v472 = vunpack.c.h.b16 %v149
    %v473 = vunpack.c.l.b16 %v150
    %v474 = vunpack.c.h.b16 %v150
    %v475 = vunpack.c.l.b16 %v151
    %v476 = vunpack.c.h.b16 %v151
    %v477 = vunpack.c.l.b16 %v152
    %v478 = vunpack.c.h.b16 %v152
    %v479 = vunpack.c.l.b16 %v153
    %v480 = vunpack.c.h.b16 %v153
    %v481 = vunpack.c.l.b16 %v154
    %v482 = vunpack.c.h.b16 %v154
    %v483 = vunpack.c.l.b16 %v155
    %v484 = vunpack.c.h.b16 %v155
    %v485 = vunpack.c.l.b16 %v156
    %v486 = vunpack.c.h.b16 %v156
    %v487 = vunpack.c.l.b16 %v157
    %v488 = vunpack.c.h.b16 %v157
    %v489 = vunpack.c.l.b16 %v158
    %v490 = vunpack.c.h.b16 %v158
    %v491 = vunpack.c.l.b16 %v159
    %v492 = vunpack.c.h.b16 %v159
    %v493 = vunpack.c.l.b16 %v160
    %v494 = vunpack.c.h.b16 %v160
    %v495 = vunpack.c.l.b16 %v161
    %v496 = vunpack.c.h.b16 %v161
    %v497 = vunpack.c.l.b16 %v162
    %v498 = vunpack.c.h.b16 %v162
    %v499 = vunpack.c.l.b16 %v163
    %v500 = vunpack.c.h.b16 %v163
    %v501 = vunpack.c.l.b16 %v164
    %v502 = vunpack.c.h.b16 %v164
    %v503 = vunpack.c.l.b16 %v165
    %v504 = vunpack.c.h.b16 %v165
    %v505 = vunpack.c.l.b16 %v166
    %v506 = vunpack.c.h.b16 %v166
    %v507 = vunpack.c.l.b16 %v167
    %v508 = vunpack.c.h.b16 %v167
    %v509 = vunpack.c.l.b16 %v168
    %v510 = vunpack.c.h.b16 %v168
    %v511 = vunpack.c.l.b16 %v169
    %v512 = vunpack.c.h.b16 %v169
    %v513 = vunpack.c.l.b16 %v170
    %v514 = vunpack.c.h.b16 %v170
    %v515 = vunpack.c.l.b16 %v171
    %v516 = vunpack.c.h.b16 %v171
    %v517 = vunpack.c.l.b16 %v172
    %v518 = vunpack.c.h.b16 %v172
    %v519 = vunpack.c.l.b16 %v173
    %v520 = vunpack.c.h.b16 %v173
    %v521 = vunpack.c.l.b16 %v174
    %v522 = vunpack.c.h.b16 %v174
    %v523 = vunpack.c.l.b16 %v175
    %v524 = vunpack.c.h.b16 %v175
    %v525 = vunpack.c.l.b16 %v176
    %v526 = vunpack.c.h.b16 %v176
    %v527 = vunpack.c.l.b16 %v177
    %v528 = vunpack.c.h.b16 %v177
    %v529 = vunpack.c.l.b16 %v178
    %v530 = vunpack.c.h.b16 %v178
    %v531 = vunpack.c.l.b16 %v179
    %v532 = vunpack.c.h.b16 %v179
    %v533 = vunpack.c.l.b16 %v180
    %v534 = vunpack.c.h.b16 %v180
    %v535 = vunpack.c.l.b16 %v181
    %v536 = vunpack.c.h.b16 %v181
    %v537 = vunpack.c.l.b16 %v182
    %v538 = vunpack.c.h.b16 %v182
    %v539 = vunpack.c.l.b16 %v183
    %v540 = vunpack.c.h.b16 %v183
    %v541 = vunpack.c.l.b16 %v184
    %v542 = vunpack.c.h.b16 %v184
    %v543 = vunpack.c.l.b16 %v185
    %v544 = vunpack.c.h.b16 %v185
    %v545 = vunpack.c.l.b16 %v186
    %v546 = vunpack.c.h.b16 %v186
    %v547 = vunpack.c.l.b16 %v187
    %v548 = vunpack.c.h.b16 %v187
    %v549 = vunpack.c.l.b16 %v188
    %v550 = vunpack.c.h.b16 %v188
    %v551 = vunpack.c.l.b16 %v189
    %v552 = vunpack.c.h.b16 %v189
    %v553 = vunpack.c.l.b16 %v190
    %v554 = vunpack.c.h.b16 %v190
    %v555 = vunpack.c.l.b16 %v191
    %v556 = vunpack.c.h.b16 %v191
    %v557 = vunpack.c.l.b16 %v192
    %v558 = vunpack.c.h.b16 %v192
    %v559 = vunpack.c.l.b16 %v193
    %v560 = vunpack.c.h.b16 %v193
    %v561 = vunpack.c.l.b16 %v194
    %v562 = vunpack.c.h.b16 %v194
    %v563 = vunpack.c.l.b16 %v195
    %v564 = vunpack.c.h.b16 %v195
    %v565 = vunpack.c.l.b16 %v196
    %v566 = vunpack.c.h.b16 %v196
    %v567 = vunpack.c.l.b16 %v197
    %v568 = vunpack.c.h.b16 %v197
    %v569 = vunpack.c.l.b16 %v198
    %v570 = vunpack.c.h.b16 %v198
    %v571 = vunpack.c.l.b16 %v199
    %v572 = vunpack.c.h.b16 %v199
    %v573 = vunpack.c.l.b16 %v200
    %v574 = vunpack.c.h.b16 %v200
    %v575 = vunpack.c.l.b16 %v201
    %v576 = vunpack.c.h.b16 %v201
    %v577 = vunpack.c.l.b16 %v202
    %v578 = vunpack.c.h.b16 %v202
    %v579 = vunpack.c.l.b16 %v203
    %v580 = vunpack.c.h.b16 %v203
    %v581 = vunpack.c.l.b16 %v204
    %v582 = vunpack.c.h.b16 %v204
    %v583 = vunpack.c.l.b16 %v205
    %v584 = vunpack.c.h.b16 %v205
    %v585 = vunpack.c.l.b16 %v206
    %v586 = vunpack.c.h.b16 %v206
    %v587 = vunpack.c.l.b16 %v207
    %v588 = vunpack.c.h.b16 %v207
    %v589 = vunpack.c.l.b16 %v208
    %v590 = vunpack.c.h.b16 %v208
    %v591 = vunpack.c.l.b16 %v209
    %v592 = vunpack.c.h.b16 %v209
    %v593 = vunpack.c.l.b16 %v210
    %v594 = vunpack.c.h.b16 %v210
    %v595 = vunpack.c.l.b16 %v211
    %v596 = vunpack.c.h.b16 %v211
    %v597 = vunpack.c.l.b16 %v212
    %v598 = vunpack.c.h.b16 %v212
    %v599 = vunpack.c.l.b16 %v213
    %v600 = vunpack.c.h.b16 %v213
    %v601 = vunpack.c.l.b16 %v214
    %v602 = vunpack.c.h.b16 %v214
    %v603 = vunpack.c.l.b16 %v215
    %v604 = vunpack.c.h.b16 %v215
    %v605 = vunpack.c.l.b16 %v216
    %v606 = vunpack.c.h.b16 %v216
    %v607 = vunpack.c.l.b16 %v217
    %v608 = vunpack.c.h.b16 %v217
    %v609 = vunpack.c.l.b16 %v218
    %v610 = vunpack.c.h.b16 %v218
    %v611 = vunpack.c.l.b16 %v219
    %v612 = vunpack.c.h.b16 %v219
    %v613 = vunpack.c.l.b16 %v220
    %v614 = vunpack.c.h.b16 %v220
    %v615 = vunpack.c.l.b16 %v221
    %v616 = vunpack.c.h.b16 %v221
    %v617 = vunpack.c.l.b16 %v222
    %v618 = vunpack.c.h.b16 %v222
    %v619 = vpack.c.b16 %v365, %v363
    %v620 = vpack.c.b16 %v366, %v364
    %v621 = vpack.c.b16 %v369, %v367
    %v622 = vpack.c.b16 %v370, %v368
    %v623 = vpack.c.b16 %v373, %v371
    %v624 = vpack.c.b16 %v374, %v372
    %v625 = vpack.c.b16 %v377, %v375
    %v626 = vpack.c.b16 %v378, %v376
    %v627 = vpack.c.b16 %v381, %v379
    %v628 = vpack.c.b16 %v382, %v380
    %v629 = vpack.c.b16 %v385, %v383
    %v630 = vpack.c.b16 %v386, %v384
    %v631 = vpack.c.b16 %v389, %v387
    %v632 = vpack.c.b16 %v390, %v388
    %v633 = vpack.c.b16 %v393, %v391
    %v634 = vpack.c.b16 %v394, %v392
    %v635 = vpack.c.b16 %v397, %v395
    %v636 = vpack.c.b16 %v398, %v396
    %v637 = vpack.c.b16 %v401, %v399
    %v638 = vpack.c.b16 %v402, %v400
    %v639 = vpack.c.b16 %v405, %v403
    %v640 = vpack.c.b16 %v406, %v404
    %v641 = vpack.c.b16 %v409, %v407
    %v642 = vpack.c.b16 %v410, %v408
    %v643 = vpack.c.b16 %v413, %v411
    %v644 = vpack.c.b16 %v414, %v412
    %v645 = vpack.c.b16 %v417, %v415
    %v646 = vpack.c.b16 %v418, %v416
    %v647 = vpack.c.b16 %v421, %v419
    %v648 = vpack.c.b16 %v422, %v420
    %v649 = vpack.c.b16 %v425, %v423
    %v650 = vpack.c.b16 %v426, %v424
    %v651 = vpack.c.b16 %v429, %v427
    %v652 = vpack.c.b16 %v430, %v428
    %v653 = vpack.c.b16 %v433, %v431
    %v654 = vpack.c.b16 %v434, %v432
    %v655 = vpack.c.b16 %v437, %v435
    %v656 = vpack.c.b16 %v438, %v436
    %v657 = vpack.c.b16 %v441, %v439
    %v658 = vpack.c.b16 %v442, %v440
    %v659 = vpack.c.b16 %v445, %v443
    %v660 = vpack.c.b16 %v446, %v444
    %v661 = vpack.c.b16 %v449, %v447
    %v662 = vpack.c.b16 %v450, %v448
    %v663 = vpack.c.b16 %v453, %v451
    %v664 = vpack.c.b16 %v454, %v452
    %v665 = vpack.c.b16 %v457, %v455
    %v666 = vpack.c.b16 %v458, %v456
    %v667 = vpack.c.b16 %v461, %v459
    %v668 = vpack.c.b16 %v462, %v460
    %v669 = vpack.c.b16 %v465, %v463
    %v670 = vpack.c.b16 %v466, %v464
    %v671 = vpack.c.b16 %v469, %v467
    %v672 = vpack.c.b16 %v470, %v468
    %v673 = vpack.c.b16 %v473, %v471
    %v674 = vpack.c.b16 %v474, %v472
    %v675 = vpack.c.b16 %v477, %v475
    %v676 = vpack.c.b16 %v478, %v476
    %v677 = vpack.c.b16 %v481, %v479
    %v678 = vpack.c.b16 %v482, %v480
    %v679 = vpack.c.b16 %v485, %v483
    %v680 = vpack.c.b16 %v486, %v484
    %v681 = vpack.c.b16 %v489, %v487
    %v682 = vpack.c.b16 %v490, %v488
    %v683 = vpack.c.b16 %v493, %v491
    %v684 = vpack.c.b16 %v494, %v492
    %v685 = vpack.c.b16 %v497, %v495
    %v686 = vpack.c.b16 %v498, %v496
    %v687 = vpack.c.b16 %v501, %v499
    %v688 = vpack.c.b16 %v502, %v500
    %v689 = vpack.c.b16 %v505, %v503
    %v690 = vpack.c.b16 %v506, %v504
    %v691 = vpack.c.b16 %v509, %v507
    %v692 = vpack.c.b16 %v510, %v508
    %v693 = vpack.c.b16 %v513, %v511
    %v694 = vpack.c.b16 %v514, %v512
    %v695 = vpack.c.b16 %v517, %v515
    %v696 = vpack.c.b16 %v518, %v516
    %v697 = vpack.c.b16 %v521, %v519
    %v698 = vpack.c.b16 %v522, %v520
    %v699 = vpack.c.b16 %v525, %v523
    %v700 = vpack.c.b16 %v526, %v524
    %v701 = vpack.c.b16 %v529, %v527
    %v702 = vpack.c.b16 %v530, %v528
    %v703 = vpack.c.b16 %v533, %v531
    %v704 = vpack.c.b16 %v534, %v532
    %v705 = vpack.c.b16 %v537, %v535
    %v706 = vpack.c.b16 %v538, %v536
    %v707 = vpack.c.b16 %v541, %v539
    %v708 = vpack.c.b16 %v542, %v540
    %v709 = vpack.c.b16 %v545, %v543
    %v710 = vpack.c.b16 %v546, %v544
    %v711 = vpack.c.b16 %v549, %v547
    %v712 = vpack.c.b16 %v550, %v548
    %v713 = vpack.c.b16 %v553, %v551
    %v714 = vpack.c.b16 %v554, %v552
    %v715 = vpack.c.b16 %v557, %v555
    %v716 = vpack.c.b16 %v558, %v556
    %v717 = vpack.c.b16 %v561, %v559
    %v718 = vpack.c.b16 %v562, %v560
    %v719 = vpack.c.b16 %v565, %v563
    %v720 = vpack.c.b16 %v566, %v564
    %v721 = vpack.c.b16 %v569, %v567
    %v722 = vpack.c.b16 %v570, %v568
    %v723 = vpack.c.b16 %v573, %v571
    %v724 = vpack.c.b16 %v574, %v572
    %v725 = vpack.c.b16 %v577, %v575
    %v726 = vpack.c.b16 %v578, %v576
    %v727 = vpack.c.b16 %v581, %v579
    %v728 = vpack.c.b16 %v582, %v580
    %v729 = vpack.c.b16 %v585, %v583
    %v730 = vpack.c.b16 %v586, %v584
    %v731 = vpack.c.b16 %v589, %v587
    %v732 = vpack.c.b16 %v590, %v588
    %v733 = vpack.c.b16 %v593, %v591
    %v734 = vpack.c.b16 %v594, %v592
    %v735 = vpack.c.b16 %v597, %v595
    %v736 = vpack.c.b16 %v598, %v596
    %v737 = vpack.c.b16 %v601, %v599
    %v738 = vpack.c.b16 %v602, %v600
    %v739 = vpack.c.b16 %v605, %v603
    %v740 = vpack.c.b16 %v606, %v604
    %v741 = vpack.c.b16 %v609, %v607
    %v742 = vpack.c.b16 %v610, %v608
    %v743 = vpack.c.b16 %v613, %v611
    %v744 = vpack.c.b16 %v614, %v612
    %v745 = vpack.c.b16 %v617, %v615
    %v746 = vpack.c.b16 %v618, %v616
    %875 = vmatprep.subr.bf16.mxu0 %v634
    %876 = vmatpush1.bf16.msra.mxu0 %v633
    %877 = vmatprep.subr.bf16.mxu0 %v632
    %878 = vmatpush1.bf16.msra.mxu0 %v631
    %879 = vmatprep.subr.bf16.mxu0 %v630
    %880 = vmatpush1.bf16.msra.mxu0 %v629
    %881 = vmatprep.subr.bf16.mxu0 %v628
    %882 = vmatpush1.bf16.msra.mxu0 %v627
    %883 = vmatprep.subr.bf16.mxu0 %v626
    %884 = vmatpush1.bf16.msra.mxu0 %v625
    %885 = vmatprep.subr.bf16.mxu0 %v624
    %886 = vmatpush1.bf16.msra.mxu0 %v623
    %887 = vmatprep.subr.bf16.mxu0 %v622
    %888 = vmatpush1.bf16.msra.mxu0 %v621
    %889 = vmatprep.subr.bf16.mxu0 %v620
    %890 = vmatpush1.bf16.msra.mxu0 %v619
    %891 = vmatprep.subr.bf16.mxu0 %v650
    %892 = vmatpush2.bf16.msra.mxu0 %v649
    %893 = vmatprep.subr.bf16.mxu0 %v648
    %894 = vmatpush2.bf16.msra.mxu0 %v647
    %895 = vmatprep.subr.bf16.mxu0 %v646
    %896 = vmatpush2.bf16.msra.mxu0 %v645
    %897 = vmatprep.subr.bf16.mxu0 %v644
    %898 = vmatpush2.bf16.msra.mxu0 %v643
    %899 = vmatprep.subr.bf16.mxu0 %v642
    %900 = vmatpush2.bf16.msra.mxu0 %v641
    %901 = vmatprep.subr.bf16.mxu0 %v640
    %902 = vmatpush2.bf16.msra.mxu0 %v639
    %903 = vmatprep.subr.bf16.mxu0 %v638
    %904 = vmatpush2.bf16.msra.mxu0 %v637
    %905 = vmatprep.subr.bf16.mxu0 %v636
    %906 = vmatpush2.bf16.msra.mxu0 %v635
    %907 = vmatprep.mubr.bf16.mxu0 %v88
    %908 = vmatmul.mubr.bf16.gmra.mxu0 %v87
    %v909 = vpop.f32.mrf.mxu0
    %v910 = vadd.f32 %v228, %v909
    %v911 = vpop.f32.mrf.mxu0
    %v912 = vadd.f32 %v232, %v911
    %v913 = vpop.f32.mrf.mxu0
    %v914 = vpop.f32.mrf.mxu0
    %915 = vdwg.mxu0
    %916 = vmatprep.subr.bf16.mxu0 %v666
    %917 = vmatpush1.bf16.msra.mxu0 %v665
    %918 = vmatprep.subr.bf16.mxu0 %v664
    %919 = vmatpush1.bf16.msra.mxu0 %v663
    %920 = vmatprep.subr.bf16.mxu0 %v662
    %921 = vmatpush1.bf16.msra.mxu0 %v661
    %922 = vmatprep.subr.bf16.mxu0 %v660
    %923 = vmatpush1.bf16.msra.mxu0 %v659
    %924 = vmatprep.subr.bf16.mxu0 %v658
    %925 = vmatpush1.bf16.msra.mxu0 %v657
    %926 = vmatprep.subr.bf16.mxu0 %v656
    %927 = vmatpush1.bf16.msra.mxu0 %v655
    %928 = vmatprep.subr.bf16.mxu0 %v654
    %929 = vmatpush1.bf16.msra.mxu0 %v653
    %930 = vmatprep.subr.bf16.mxu0 %v652
    %931 = vmatpush1.bf16.msra.mxu0 %v651
    %932 = vmatprep.subr.bf16.mxu0 %v682
    %933 = vmatpush2.bf16.msra.mxu0 %v681
    %934 = vmatprep.subr.bf16.mxu0 %v680
    %935 = vmatpush2.bf16.msra.mxu0 %v679
    %936 = vmatprep.subr.bf16.mxu0 %v678
    %937 = vmatpush2.bf16.msra.mxu0 %v677
    %938 = vmatprep.subr.bf16.mxu0 %v676
    %939 = vmatpush2.bf16.msra.mxu0 %v675
    %940 = vmatprep.subr.bf16.mxu0 %v674
    %941 = vmatpush2.bf16.msra.mxu0 %v673
    %942 = vmatprep.subr.bf16.mxu0 %v672
    %943 = vmatpush2.bf16.msra.mxu0 %v671
    %944 = vmatprep.subr.bf16.mxu0 %v670
    %945 = vmatpush2.bf16.msra.mxu0 %v669
    %946 = vmatprep.subr.bf16.mxu0 %v668
    %947 = vmatpush2.bf16.msra.mxu0 %v667
    %948 = vmatprep.mubr.bf16.mxu0 %v90
    %949 = vmatmul.mubr.bf16.gmra.mxu0 %v89
    %v950 = vpop.f32.mrf.mxu0
    %v951 = vadd.f32 %v910, %v950
    %v952 = vpop.f32.mrf.mxu0
    %v953 = vadd.f32 %v912, %v952
    %v954 = vpop.f32.mrf.mxu0
    %v955 = vpop.f32.mrf.mxu0
    %956 = vdwg.mxu0
    %957 = vmatprep.subr.bf16.mxu0 %v698
    %958 = vmatpush1.bf16.msra.mxu0 %v697
    %959 = vmatprep.subr.bf16.mxu0 %v696
    %960 = vmatpush1.bf16.msra.mxu0 %v695
    %961 = vmatprep.subr.bf16.mxu0 %v694
    %962 = vmatpush1.bf16.msra.mxu0 %v693
    %963 = vmatprep.subr.bf16.mxu0 %v692
    %964 = vmatpush1.bf16.msra.mxu0 %v691
    %965 = vmatprep.subr.bf16.mxu0 %v690
    %966 = vmatpush1.bf16.msra.mxu0 %v689
    %967 = vmatprep.subr.bf16.mxu0 %v688
    %968 = vmatpush1.bf16.msra.mxu0 %v687
    %969 = vmatprep.subr.bf16.mxu0 %v686
    %970 = vmatpush1.bf16.msra.mxu0 %v685
    %971 = vmatprep.subr.bf16.mxu0 %v684
    %972 = vmatpush1.bf16.msra.mxu0 %v683
    %973 = vmatprep.subr.bf16.mxu0 %v714
    %974 = vmatpush2.bf16.msra.mxu0 %v713
    %975 = vmatprep.subr.bf16.mxu0 %v712
    %976 = vmatpush2.bf16.msra.mxu0 %v711
    %977 = vmatprep.subr.bf16.mxu0 %v710
    %978 = vmatpush2.bf16.msra.mxu0 %v709
    %979 = vmatprep.subr.bf16.mxu0 %v708
    %980 = vmatpush2.bf16.msra.mxu0 %v707
    %981 = vmatprep.subr.bf16.mxu0 %v706
    %982 = vmatpush2.bf16.msra.mxu0 %v705
    %983 = vmatprep.subr.bf16.mxu0 %v704
    %984 = vmatpush2.bf16.msra.mxu0 %v703
    %985 = vmatprep.subr.bf16.mxu0 %v702
    %986 = vmatpush2.bf16.msra.mxu0 %v701
    %987 = vmatprep.subr.bf16.mxu0 %v700
    %988 = vmatpush2.bf16.msra.mxu0 %v699
    %989 = vmatprep.mubr.bf16.mxu0 %v92
    %990 = vmatmul.mubr.bf16.gmra.mxu0 %v91
    %v991 = vpop.f32.mrf.mxu0
    %v992 = vadd.f32 %v951, %v991
    %v993 = vpop.f32.mrf.mxu0
    %v994 = vadd.f32 %v953, %v993
    %v995 = vpop.f32.mrf.mxu0
    %v996 = vpop.f32.mrf.mxu0
    %997 = vdwg.mxu0
    %998 = vmatprep.subr.bf16.mxu0 %v730
    %999 = vmatpush1.bf16.msra.mxu0 %v729
    %1000 = vmatprep.subr.bf16.mxu0 %v728
    %1001 = vmatpush1.bf16.msra.mxu0 %v727
    %1002 = vmatprep.subr.bf16.mxu0 %v726
    %1003 = vmatpush1.bf16.msra.mxu0 %v725
    %1004 = vmatprep.subr.bf16.mxu0 %v724
    %1005 = vmatpush1.bf16.msra.mxu0 %v723
    %1006 = vmatprep.subr.bf16.mxu0 %v722
    %1007 = vmatpush1.bf16.msra.mxu0 %v721
    %1008 = vmatprep.subr.bf16.mxu0 %v720
    %1009 = vmatpush1.bf16.msra.mxu0 %v719
    %1010 = vmatprep.subr.bf16.mxu0 %v718
    %1011 = vmatpush1.bf16.msra.mxu0 %v717
    %1012 = vmatprep.subr.bf16.mxu0 %v716
    %1013 = vmatpush1.bf16.msra.mxu0 %v715
    %1014 = vmatprep.subr.bf16.mxu0 %v746
    %1015 = vmatpush2.bf16.msra.mxu0 %v745
    %1016 = vmatprep.subr.bf16.mxu0 %v744
    %1017 = vmatpush2.bf16.msra.mxu0 %v743
    %1018 = vmatprep.subr.bf16.mxu0 %v742
    %1019 = vmatpush2.bf16.msra.mxu0 %v741
    %1020 = vmatprep.subr.bf16.mxu0 %v740
    %1021 = vmatpush2.bf16.msra.mxu0 %v739
    %1022 = vmatprep.subr.bf16.mxu0 %v738
    %1023 = vmatpush2.bf16.msra.mxu0 %v737
    %1024 = vmatprep.subr.bf16.mxu0 %v736
    %1025 = vmatpush2.bf16.msra.mxu0 %v735
    %1026 = vmatprep.subr.bf16.mxu0 %v734
    %1027 = vmatpush2.bf16.msra.mxu0 %v733
    %1028 = vmatprep.subr.bf16.mxu0 %v732
    %1029 = vmatpush2.bf16.msra.mxu0 %v731
    %1030 = vmatprep.mubr.bf16.mxu0 %v94
    %1031 = vmatmul.mubr.bf16.gmra.mxu0 %v93
    %v1032 = vpop.f32.mrf.mxu0
    %v1033 = vadd.f32 %v992, %v1032
    %v1034 = vpop.f32.mrf.mxu0
    %v1035 = vadd.f32 %v994, %v1034
    %v1036 = vpop.f32.mrf.mxu0
    %v1037 = vpop.f32.mrf.mxu0
    %1038 = vdwg.mxu0
    %v1039 = vmax.f32 %v1033, 0.0
    %v1040 = vmax.f32 %v1035, 0.0
    %v1043 = vcombine.low %v1039, %v1040
    %v1045 = vunpack.c.l.s4 1983009808
    %v1046 = vunpack.c.0.s8 %v1045
    %v1047 = vlaneseq
    %v1048 = vshrl.u32 %v1047, 7
    %v1049 = vsub.s32 %v1046, %v1048
    %v1050 = vrot.slane %v1043, %v1049
    %1052 = vst [vmem:[#allocation7] sm:$0xf] %v1050
    // Predicated region
    $region22: #{tpu_custom_call.1} parent=1 // pred_check
      _
    $region23: #{tpu_custom_call.1} parent=1 // pred_check_branch
      %1054 = sbr.rel (0) target = $region25
    $region24: #{tpu_custom_call.1} parent=1 // pred_region
      %s1056 = ssub.s32 64, 64
      %1057 = vsyncadd [#allocation4], %s1056
      %s1059 = sshll.u32 [#allocation7], 4
      %s1060 = int_to_ptr.vmem [resolvable:$true] %s1059
      %1062 = dma.vmem_to_hbm [thread:$0]  %s1060, 64, %s3, [#allocation4]
    $region25: #{tpu_custom_call.1} parent=1 // pred_fallthru
      _
    // Predicated region
    $region26: #{tpu_custom_call.1} parent=1 // pred_check
      _
    $region27: #{tpu_custom_call.1} parent=1 // pred_check_branch
      %1064 = sbr.rel (0) target = $region29
    $region28: #{tpu_custom_call.1} parent=1 // pred_region
      %1065 = dma.done [#allocation4], 64
    $region29: #{tpu_custom_call.1} parent=1 // pred_fallthru
      _
    %1066 = vsyncpa [#allocation3], 1
    %1067 = vsyncpa [#allocation6], 1
    %1068 = vsyncpa [#allocation4], 1

</llo_original>
